<compile_context>
chip_gen: v6e
topology: v6e:2x2x1
jax: 0.10.0
libtpu: 0.0.40
codegen_flags: <defaults>
</compile_context>

<pallas_src>
import math

import jax
import jax.numpy as jnp
from jax.experimental import pallas as pl
from jax.experimental.pallas import tpu as pltpu

_LANES = 128
_SUBLANES = 8
_TILE_VMEM_BUDGET = 12 << 20   # target for double-buffered x + out tiles
_MAX_TM = 4096                 # cap on folded rows per grid step


def _round_up(x, mult):
    return ((x + mult - 1) // mult) * mult


def _choose_fold(c_in, d_model):
    """Smallest fold f (rows packed into the lane dim) such that, ideally,
    both f*c_in and f*d_model are multiples of 128 (lane-dense LHS + output)."""
    f_k = _LANES // math.gcd(c_in, _LANES)
    f_n = _LANES // math.gcd(d_model, _LANES)
    f_both = f_k * f_n // math.gcd(f_k, f_n)
    for f in (f_both, f_n, 1):
        k_f, n_f = f * c_in, f * d_model
        if k_f <= 2048 and n_f <= 4096 and 4 * k_f * n_f <= (8 << 20):
            return f
    # f == 1 fallback: sub-128-lane output -> masked stores (correct, slow).
    return 1


def fold_linear_params(weight, bias):
    """Precompute (once, at 'module init') the folded parameters.

    weight: (d_model, c_in), bias: (d_model,)
    returns w_f: (f*c_in, f*d_model) block-diagonal, b2d: (1, f*d_model), f.
    """
    d_model, c_in = weight.shape
    assert bias.shape == (d_model,)
    f = _choose_fold(c_in, d_model)
    w_t = weight.T                                            # (c_in, d_model)
    if f > 1:
        w_f = jnp.kron(jnp.eye(f, dtype=w_t.dtype), w_t)      # block-diagonal
        b_f = jnp.tile(bias, f)
    else:
        w_f, b_f = w_t, bias
    return w_f, b_f.reshape(1, f * d_model), f


def _linear_kernel(x_ref, w_ref, b_ref, o_ref):
    # x_ref: (tm, Kf) streamed tile; w_ref: (Kf, Nf) resident; b_ref: (1, Nf);
    # o_ref: (tm, Nf) with Kf, Nf multiples of 128 on the folded path.
    acc = jnp.dot(x_ref[...], w_ref[...], preferred_element_type=jnp.float32)
    acc = acc + b_ref[...].astype(jnp.float32)
    o_ref[...] = acc.astype(o_ref.dtype)


def spatial_encoding_folded(x, w_f, b2d, fold, *, out_dtype=None):
    """Apply the (pre-folded) linear layer:  y = x @ W.T + b  over the last dim.

    x: (..., c_in);  w_f/b2d/fold from fold_linear_params();
    returns (..., d_model) in out_dtype (default: x.dtype).
    """
    *lead, c_in = x.shape
    k_f, n_f = w_f.shape
    assert k_f == fold * c_in
    d_model = n_f // fold
    out_dtype = out_dtype if out_dtype is not None else x.dtype

    m = 1
    for s in lead:
        m *= s

    x2d = x.reshape(m, c_in)
    # Pad only up to a multiple of the fold factor (zero for typical shapes;
    # the reshape below is then a free contiguous view).  No padding to tile
    # multiples: the partial last grid block reads OOB garbage that lands only
    # in rows the caller never sees, and its OOB stores are dropped by Pallas.
    pad = (-m) % fold
    if pad:
        x2d = jnp.pad(x2d, ((0, pad), (0, 0)))
    m_p = m + pad
    m_f = m_p // fold
    x_f = x2d.reshape(m_f, k_f)

    # Row-tile selection (in folded rows):
    #   * large enough to amortize the ~0.35 us per-grid-step overhead,
    #   * double-buffered x + out tiles under ~12 MiB of VMEM,
    #   * >= 4 grid steps on large inputs so the pipeline overlaps DMA with
    #     compute and the "parallel" M axis can split across v7x's two TCs.
    bytes_per_row = 4 * (k_f + n_f)
    if m_f <= _SUBLANES:
        tm = m_f                                   # single full-array block
    else:
        tm = (_TILE_VMEM_BUDGET // (2 * bytes_per_row)) // _SUBLANES * _SUBLANES
        tm = max(_SUBLANES, min(tm, _MAX_TM))
        if m_f >= 4 * _SUBLANES:
            tm = min(tm, _round_up(pl.cdiv(m_f, 4), _SUBLANES))
        tm = min(tm, _round_up(m_f, _SUBLANES))
    grid = pl.cdiv(m_f, tm)

    vmem_bytes = 2 * tm * bytes_per_row + 4 * (k_f * n_f + n_f)
    vmem_limit = int(min(64 << 20, max(vmem_bytes + (8 << 20), 32 << 20)))

    out = pl.pallas_call(
        _linear_kernel,
        out_shape=jax.ShapeDtypeStruct((m_f, n_f), out_dtype),
        grid=(grid,),
        in_specs=[
            pl.BlockSpec((tm, k_f), lambda i: (i, 0)),    # x: streamed over M
            pl.BlockSpec((k_f, n_f), lambda i: (0, 0)),   # weight: VMEM-resident
            pl.BlockSpec((1, n_f), lambda i: (0, 0)),     # bias:   VMEM-resident
        ],
        out_specs=pl.BlockSpec((tm, n_f), lambda i: (i, 0)),
        compiler_params=pltpu.CompilerParams(
            dimension_semantics=("parallel",),
            vmem_limit_bytes=vmem_limit),
        cost_estimate=pl.CostEstimate(
            flops=2 * m_f * k_f * n_f,
            transcendentals=0,
            bytes_accessed=int(4 * (m_f * k_f + k_f * n_f + n_f)
                               + jnp.dtype(out_dtype).itemsize * m_f * n_f)),
    )(x_f, w_f, b2d)

    y = out.reshape(m_p, d_model)
    if m_p != m:
        y = y[:m]          # only materializes a slice when a fold-pad was added
    return y.reshape(*lead, d_model)


def spatial_encoding(x, weight, bias, *, out_dtype=None):
    """Convenience wrapper (folds params per call).  In a real model, call
    fold_linear_params() once at init and spatial_encoding_folded() per step."""
    w_f, b2d, f = fold_linear_params(weight, bias)
    return spatial_encoding_folded(x, w_f, b2d, f, out_dtype=out_dtype)


if __name__ == "__main__":
    # Small shapes consistent with the forward: x is (batch, seq, c_in).
    batch, seq, c_in, d_model = 2, 8, 4, 32

    key = jax.random.PRNGKey(0)
    kx, kw, kb = jax.random.split(key, 3)

    x = jax.random.normal(kx, (batch, seq, c_in), dtype=jnp.float32)
    # Deterministic parameter init (mimics nn.Linear's uniform fan-in init).
    bound = 1.0 / (c_in ** 0.5)
    weight = jax.random.uniform(kw, (d_model, c_in), jnp.float32, -bound, bound)
    bias = jax.random.uniform(kb, (d_model,), jnp.float32, -bound, bound)

    # "Module init": fold parameters once, reuse for every forward call.
    w_f, b2d, f = fold_linear_params(weight, bias)
    w_f, b2d = jax.block_until_ready((w_f, b2d))

    y = jax.block_until_ready(spatial_encoding_folded(x, w_f, b2d, f))
    y_ref = x @ weight.T + bias
    assert y.shape == (batch, seq, d_model)
    assert jnp.allclose(y, y_ref, atol=1e-4, rtol=1e-4)

    # Larger batch*seq to exercise the multi-tile (grid >= 4) pipelined path.
    batch2, seq2 = 4, 4096
    x2 = jax.random.normal(kx, (batch2, seq2, c_in), dtype=jnp.float32)
    y2 = jax.block_until_ready(spatial_encoding_folded(x2, w_f, b2d, f))
    y2_ref = x2 @ weight.T + bias
    assert y2.shape == (batch2, seq2, d_model)
    assert jnp.allclose(y2, y2_ref, atol=1e-4, rtol=1e-4)

    print("KERNEL_OK")
</pallas_src>

<mosaic_0001>
module attributes {stable_mosaic.version = 11 : i64} {
  func.func @_linear_kernel(%arg0: i32, %arg1: memref<1x128xf32, #tpu.memory_space<vmem>>, %arg2: memref<128x1024xf32, #tpu.memory_space<vmem>>, %arg3: memref<1x1024xf32, #tpu.memory_space<vmem>>, %arg4: memref<1x1024xf32, #tpu.memory_space<vmem>>) attributes {dimension_semantics = [#tpu.dimension_semantics<parallel>], iteration_bounds = array<i64: 1>, scalar_prefetch = 0 : i64, scratch_operands = 0 : i64, tpu.core_type = #tpu.core_type<tc>, window_params = [{transform_indices = @transform_0, window_bounds = array<i64: 1, 128>}, {pipeline_mode = #tpu.pipeline_mode<synchronous>, transform_indices = @transform_1, window_bounds = array<i64: 128, 1024>}, {pipeline_mode = #tpu.pipeline_mode<synchronous>, transform_indices = @transform_2, window_bounds = array<i64: 1, 1024>}, {transform_indices = @transform_3, window_bounds = array<i64: 1, 1024>}]} {
    %c0 = arith.constant 0 : index
    %c0_0 = arith.constant 0 : index
    %0 = vector.load %arg1[%c0, %c0_0] : memref<1x128xf32, #tpu.memory_space<vmem>>, vector<1x128xf32>
    %c0_1 = arith.constant 0 : index
    %c0_2 = arith.constant 0 : index
    %1 = vector.load %arg2[%c0_1, %c0_2] : memref<128x1024xf32, #tpu.memory_space<vmem>>, vector<128x1024xf32>
    %cst = arith.constant dense<0.000000e+00> : vector<1x1024xf32>
    %2 = tpu.matmul %0, %1, %cst {dimension_numbers = #tpu.dot_dimension_numbers<[1], [0], [0], [1], [0, 0, 1, 1], [], []>} : vector<1x128xf32>, vector<128x1024xf32>, vector<1x1024xf32> -> vector<1x1024xf32>
    %c0_3 = arith.constant 0 : index
    %c0_4 = arith.constant 0 : index
    %3 = vector.load %arg3[%c0_3, %c0_4] : memref<1x1024xf32, #tpu.memory_space<vmem>>, vector<1x1024xf32>
    %4 = arith.addf %2, %3 : vector<1x1024xf32>
    %c0_5 = arith.constant 0 : index
    %c0_6 = arith.constant 0 : index
    %5 = vector.load %arg4[%c0_5, %c0_6] : memref<1x1024xf32, #tpu.memory_space<vmem>>, vector<1x1024xf32>
    tpu.vector_store %arg4[%c0_5, %c0_6], %4 {strides = array<i32>} : memref<1x1024xf32, #tpu.memory_space<vmem>>, vector<1x1024xf32>,
    return
  }
  func.func @transform_0(%arg0: i32) -> (i32, i32) {
    %c0_i32 = arith.constant 0 : i32
    %c0_i32_0 = arith.constant 0 : i32
    return %arg0, %c0_i32 : i32, i32
  }
  func.func @transform_1(%arg0: i32) -> (i32, i32) {
    %c0_i32 = arith.constant 0 : i32
    %c0_i32_0 = arith.constant 0 : i32
    %c0_i32_1 = arith.constant 0 : i32
    return %c0_i32, %c0_i32_0 : i32, i32
  }
  func.func @transform_2(%arg0: i32) -> (i32, i32) {
    %c0_i32 = arith.constant 0 : i32
    %c0_i32_0 = arith.constant 0 : i32
    %c0_i32_1 = arith.constant 0 : i32
    return %c0_i32, %c0_i32_0 : i32, i32
  }
  func.func @transform_3(%arg0: i32) -> (i32, i32) {
    %c0_i32 = arith.constant 0 : i32
    %c0_i32_0 = arith.constant 0 : i32
    return %arg0, %c0_i32 : i32, i32
  }
}

</mosaic_0001>

<llo_original>
// kernel: tpu_custom_call.1
$region0: #{tpu_custom_call.1}
  #allocation0 [shape = 'u32[]', space=smem, size = 0x4, offset = 0x4, fixed_abs, tag = 'smem constant byte address 0x4 - core index']
  #allocation1 [shape = 'u32[144,128]{1,0:T(1,128)}', space=vmem, size = 0x12000, scoped, tag = 'internal scratch']
  %s0 = inlined_call_operand.hbm [shape: f32[1,128], index: 0, kind: input, shape index: {}]
  %s1 = inlined_call_operand.hbm [shape: f32[128,1024], index: 1, kind: input, shape index: {}]
  %s2 = inlined_call_operand.hbm [shape: f32[1,1024], index: 2, kind: input, shape index: {}]
  %s3 = inlined_call_operand.hbm [shape: f32[1,1024], index: 3, kind: output, shape index: {}]
  %s4 = sld [smem:[#allocation0]]
  $region34: #{tpu_custom_call.1} parent=0
    _
  %s6 = ssub.s32 1, %s4
  %s7 = scalar_select 0, %s6, %s4
  $region1: #{tpu_custom_call.1} parent=0
    #allocation2 [shape = 'u8[512]{0}', space=vmem, size = 0x400, scoped, tag = 'input window, operand 0, single buffered']
    #allocation3 [shape = 's32[1]{0}', space=sflag, size = 0x4, scoped, tag = 'scoped memory for tpu_custom_call.1']
    #allocation4 [shape = 's32[1]{0}', space=sflag, size = 0x4, scoped, tag = 'scoped memory for tpu_custom_call.1']
    #allocation5 [shape = 'u8[524288]{0}', space=vmem, size = 0x80000, scoped, tag = 'input window, operand 1, single buffered']
    #allocation6 [shape = 's32[1]{0}', space=sflag, size = 0x4, scoped, tag = 'scoped memory for tpu_custom_call.1']
    #allocation7 [shape = 'u8[4096]{0}', space=vmem, size = 0x1000, scoped, tag = 'input window, operand 2, single buffered']
    #allocation8 [shape = 'u8[4096]{0}', space=vmem, size = 0x1000, scoped, tag = 'output window, operand 0, single buffered']
    %8 = vsyncpa [#allocation3], 0
    %9 = vsyncpa [#allocation6], 0
    %10 = vsyncpa [#allocation4], 0
    // Predicated region
    $region2: #{tpu_custom_call.1} parent=1 // pred_check
      _
    $region3: #{tpu_custom_call.1} parent=1 // pred_check_branch
      %12 = sbr.rel (0) target = $region5
    $region4: #{tpu_custom_call.1} parent=1 // pred_region
      %s14 = ssub.s32 16, 16
      %15 = vsyncadd [#allocation3], %s14
      %s17 = sshll.u32 [#allocation2], 4
      %s18 = int_to_ptr.vmem [resolvable:$true] %s17
      %20 = dma.hbm_to_vmem [thread:$0]  %s0, 16, %s18, [#allocation3]
    $region5: #{tpu_custom_call.1} parent=1 // pred_fallthru
      _
    // Predicated region
    $region6: #{tpu_custom_call.1} parent=1 // pred_check
      _
    $region7: #{tpu_custom_call.1} parent=1 // pred_check_branch
      %22 = sbr.rel (0) target = $region9
    $region8: #{tpu_custom_call.1} parent=1 // pred_region
      %s24 = ssub.s32 16384, 16384
      %25 = vsyncadd [#allocation6], %s24
      %s26 = sshll.u32 [#allocation5], 4
      %s27 = int_to_ptr.vmem [resolvable:$true] %s26
      %32 = dma.hbm_to_vmem [thread:$0]  %s1, 16384, %s27, [#allocation6], 1024, 1024, 64
    $region9: #{tpu_custom_call.1} parent=1 // pred_fallthru
      _
    // Predicated region
    $region10: #{tpu_custom_call.1} parent=1 // pred_check
      _
    $region11: #{tpu_custom_call.1} parent=1 // pred_check_branch
      %34 = sbr.rel (0) target = $region13
    $region12: #{tpu_custom_call.1} parent=1 // pred_region
      %s36 = ssub.s32 128, 128
      %37 = vsyncadd [#allocation6], %s36
      %s39 = sshll.u32 [#allocation7], 4
      %s40 = int_to_ptr.vmem [resolvable:$true] %s39
      %42 = dma.hbm_to_vmem [thread:$0]  %s2, 128, %s40, [#allocation6]
    $region13: #{tpu_custom_call.1} parent=1 // pred_fallthru
      _
    // Predicated region
    $region14: #{tpu_custom_call.1} parent=1 // pred_check
      _
    $region15: #{tpu_custom_call.1} parent=1 // pred_check_branch
      %44 = sbr.rel (0) target = $region17
    $region16: #{tpu_custom_call.1} parent=1 // pred_region
      %45 = dma.done [#allocation3], 16
    $region17: #{tpu_custom_call.1} parent=1 // pred_fallthru
      _
    // Predicated region
    $region18: #{tpu_custom_call.1} parent=1 // pred_check
      _
    $region19: #{tpu_custom_call.1} parent=1 // pred_check_branch
      %47 = sbr.rel (0) target = $region21
    $region20: #{tpu_custom_call.1} parent=1 // pred_region
      %48 = dma.done [#allocation6], 16384
    $region21: #{tpu_custom_call.1} parent=1 // pred_fallthru
      _
    // Predicated region
    $region22: #{tpu_custom_call.1} parent=1 // pred_check
      _
    $region23: #{tpu_custom_call.1} parent=1 // pred_check_branch
      %50 = sbr.rel (0) target = $region25
    $region24: #{tpu_custom_call.1} parent=1 // pred_region
      %51 = dma.done [#allocation6], 128
    $region25: #{tpu_custom_call.1} parent=1 // pred_fallthru
      _
    %v52 = vld [vmem:[#allocation2] sm:$0x1]
    %v53 = vld [vmem:[#allocation5] sm:$0xff]
    %v54 = vld [vmem:[#allocation5 + $0x8] sm:$0xff]
    %v55 = vld [vmem:[#allocation5 + $0x10] sm:$0xff]
    %v56 = vld [vmem:[#allocation5 + $0x18] sm:$0xff]
    %v57 = vld [vmem:[#allocation5 + $0x20] sm:$0xff]
    %v58 = vld [vmem:[#allocation5 + $0x28] sm:$0xff]
    %v59 = vld [vmem:[#allocation5 + $0x30] sm:$0xff]
    %v60 = vld [vmem:[#allocation5 + $0x38] sm:$0xff]
    %v61 = vld [vmem:[#allocation5 + $0x40] sm:$0xff]
    %v62 = vld [vmem:[#allocation5 + $0x48] sm:$0xff]
    %v63 = vld [vmem:[#allocation5 + $0x50] sm:$0xff]
    %v64 = vld [vmem:[#allocation5 + $0x58] sm:$0xff]
    %v65 = vld [vmem:[#allocation5 + $0x60] sm:$0xff]
    %v66 = vld [vmem:[#allocation5 + $0x68] sm:$0xff]
    %v67 = vld [vmem:[#allocation5 + $0x70] sm:$0xff]
    %v68 = vld [vmem:[#allocation5 + $0x78] sm:$0xff]
    %v69 = vld [vmem:[#allocation5 + $0x80] sm:$0xff]
    %v70 = vld [vmem:[#allocation5 + $0x88] sm:$0xff]
    %v71 = vld [vmem:[#allocation5 + $0x90] sm:$0xff]
    %v72 = vld [vmem:[#allocation5 + $0x98] sm:$0xff]
    %v73 = vld [vmem:[#allocation5 + $0xa0] sm:$0xff]
    %v74 = vld [vmem:[#allocation5 + $0xa8] sm:$0xff]
    %v75 = vld [vmem:[#allocation5 + $0xb0] sm:$0xff]
    %v76 = vld [vmem:[#allocation5 + $0xb8] sm:$0xff]
    %v77 = vld [vmem:[#allocation5 + $0xc0] sm:$0xff]
    %v78 = vld [vmem:[#allocation5 + $0xc8] sm:$0xff]
    %v79 = vld [vmem:[#allocation5 + $0xd0] sm:$0xff]
    %v80 = vld [vmem:[#allocation5 + $0xd8] sm:$0xff]
    %v81 = vld [vmem:[#allocation5 + $0xe0] sm:$0xff]
    %v82 = vld [vmem:[#allocation5 + $0xe8] sm:$0xff]
    %v83 = vld [vmem:[#allocation5 + $0xf0] sm:$0xff]
    %v84 = vld [vmem:[#allocation5 + $0xf8] sm:$0xff]
    %v85 = vld [vmem:[#allocation5 + $0x100] sm:$0xff]
    %v86 = vld [vmem:[#allocation5 + $0x108] sm:$0xff]
    %v87 = vld [vmem:[#allocation5 + $0x110] sm:$0xff]
    %v88 = vld [vmem:[#allocation5 + $0x118] sm:$0xff]
    %v89 = vld [vmem:[#allocation5 + $0x120] sm:$0xff]
    %v90 = vld [vmem:[#allocation5 + $0x128] sm:$0xff]
    %v91 = vld [vmem:[#allocation5 + $0x130] sm:$0xff]
    %v92 = vld [vmem:[#allocation5 + $0x138] sm:$0xff]
    %v93 = vld [vmem:[#allocation5 + $0x140] sm:$0xff]
    %v94 = vld [vmem:[#allocation5 + $0x148] sm:$0xff]
    %v95 = vld [vmem:[#allocation5 + $0x150] sm:$0xff]
    %v96 = vld [vmem:[#allocation5 + $0x158] sm:$0xff]
    %v97 = vld [vmem:[#allocation5 + $0x160] sm:$0xff]
    %v98 = vld [vmem:[#allocation5 + $0x168] sm:$0xff]
    %v99 = vld [vmem:[#allocation5 + $0x170] sm:$0xff]
    %v100 = vld [vmem:[#allocation5 + $0x178] sm:$0xff]
    %v101 = vld [vmem:[#allocation5 + $0x180] sm:$0xff]
    %v102 = vld [vmem:[#allocation5 + $0x188] sm:$0xff]
    %v103 = vld [vmem:[#allocation5 + $0x190] sm:$0xff]
    %v104 = vld [vmem:[#allocation5 + $0x198] sm:$0xff]
    %v105 = vld [vmem:[#allocation5 + $0x1a0] sm:$0xff]
    %v106 = vld [vmem:[#allocation5 + $0x1a8] sm:$0xff]
    %v107 = vld [vmem:[#allocation5 + $0x1b0] sm:$0xff]
    %v108 = vld [vmem:[#allocation5 + $0x1b8] sm:$0xff]
    %v109 = vld [vmem:[#allocation5 + $0x1c0] sm:$0xff]
    %v110 = vld [vmem:[#allocation5 + $0x1c8] sm:$0xff]
    %v111 = vld [vmem:[#allocation5 + $0x1d0] sm:$0xff]
    %v112 = vld [vmem:[#allocation5 + $0x1d8] sm:$0xff]
    %v113 = vld [vmem:[#allocation5 + $0x1e0] sm:$0xff]
    %v114 = vld [vmem:[#allocation5 + $0x1e8] sm:$0xff]
    %v115 = vld [vmem:[#allocation5 + $0x1f0] sm:$0xff]
    %v116 = vld [vmem:[#allocation5 + $0x1f8] sm:$0xff]
    %v117 = vld [vmem:[#allocation5 + $0x200] sm:$0xff]
    %v118 = vld [vmem:[#allocation5 + $0x208] sm:$0xff]
    %v119 = vld [vmem:[#allocation5 + $0x210] sm:$0xff]
    %v120 = vld [vmem:[#allocation5 + $0x218] sm:$0xff]
    %v121 = vld [vmem:[#allocation5 + $0x220] sm:$0xff]
    %v122 = vld [vmem:[#allocation5 + $0x228] sm:$0xff]
    %v123 = vld [vmem:[#allocation5 + $0x230] sm:$0xff]
    %v124 = vld [vmem:[#allocation5 + $0x238] sm:$0xff]
    %v125 = vld [vmem:[#allocation5 + $0x240] sm:$0xff]
    %v126 = vld [vmem:[#allocation5 + $0x248] sm:$0xff]
    %v127 = vld [vmem:[#allocation5 + $0x250] sm:$0xff]
    %v128 = vld [vmem:[#allocation5 + $0x258] sm:$0xff]
    %v129 = vld [vmem:[#allocation5 + $0x260] sm:$0xff]
    %v130 = vld [vmem:[#allocation5 + $0x268] sm:$0xff]
    %v131 = vld [vmem:[#allocation5 + $0x270] sm:$0xff]
    %v132 = vld [vmem:[#allocation5 + $0x278] sm:$0xff]
    %v133 = vld [vmem:[#allocation5 + $0x280] sm:$0xff]
    %v134 = vld [vmem:[#allocation5 + $0x288] sm:$0xff]
    %v135 = vld [vmem:[#allocation5 + $0x290] sm:$0xff]
    %v136 = vld [vmem:[#allocation5 + $0x298] sm:$0xff]
    %v137 = vld [vmem:[#allocation5 + $0x2a0] sm:$0xff]
    %v138 = vld [vmem:[#allocation5 + $0x2a8] sm:$0xff]
    %v139 = vld [vmem:[#allocation5 + $0x2b0] sm:$0xff]
    %v140 = vld [vmem:[#allocation5 + $0x2b8] sm:$0xff]
    %v141 = vld [vmem:[#allocation5 + $0x2c0] sm:$0xff]
    %v142 = vld [vmem:[#allocation5 + $0x2c8] sm:$0xff]
    %v143 = vld [vmem:[#allocation5 + $0x2d0] sm:$0xff]
    %v144 = vld [vmem:[#allocation5 + $0x2d8] sm:$0xff]
    %v145 = vld [vmem:[#allocation5 + $0x2e0] sm:$0xff]
    %v146 = vld [vmem:[#allocation5 + $0x2e8] sm:$0xff]
    %v147 = vld [vmem:[#allocation5 + $0x2f0] sm:$0xff]
    %v148 = vld [vmem:[#allocation5 + $0x2f8] sm:$0xff]
    %v149 = vld [vmem:[#allocation5 + $0x300] sm:$0xff]
    %v150 = vld [vmem:[#allocation5 + $0x308] sm:$0xff]
    %v151 = vld [vmem:[#allocation5 + $0x310] sm:$0xff]
    %v152 = vld [vmem:[#allocation5 + $0x318] sm:$0xff]
    %v153 = vld [vmem:[#allocation5 + $0x320] sm:$0xff]
    %v154 = vld [vmem:[#allocation5 + $0x328] sm:$0xff]
    %v155 = vld [vmem:[#allocation5 + $0x330] sm:$0xff]
    %v156 = vld [vmem:[#allocation5 + $0x338] sm:$0xff]
    %v157 = vld [vmem:[#allocation5 + $0x340] sm:$0xff]
    %v158 = vld [vmem:[#allocation5 + $0x348] sm:$0xff]
    %v159 = vld [vmem:[#allocation5 + $0x350] sm:$0xff]
    %v160 = vld [vmem:[#allocation5 + $0x358] sm:$0xff]
    %v161 = vld [vmem:[#allocation5 + $0x360] sm:$0xff]
    %v162 = vld [vmem:[#allocation5 + $0x368] sm:$0xff]
    %v163 = vld [vmem:[#allocation5 + $0x370] sm:$0xff]
    %v164 = vld [vmem:[#allocation5 + $0x378] sm:$0xff]
    %v165 = vld [vmem:[#allocation5 + $0x380] sm:$0xff]
    %v166 = vld [vmem:[#allocation5 + $0x388] sm:$0xff]
    %v167 = vld [vmem:[#allocation5 + $0x390] sm:$0xff]
    %v168 = vld [vmem:[#allocation5 + $0x398] sm:$0xff]
    %v169 = vld [vmem:[#allocation5 + $0x3a0] sm:$0xff]
    %v170 = vld [vmem:[#allocation5 + $0x3a8] sm:$0xff]
    %v171 = vld [vmem:[#allocation5 + $0x3b0] sm:$0xff]
    %v172 = vld [vmem:[#allocation5 + $0x3b8] sm:$0xff]
    %v173 = vld [vmem:[#allocation5 + $0x3c0] sm:$0xff]
    %v174 = vld [vmem:[#allocation5 + $0x3c8] sm:$0xff]
    %v175 = vld [vmem:[#allocation5 + $0x3d0] sm:$0xff]
    %v176 = vld [vmem:[#allocation5 + $0x3d8] sm:$0xff]
    %v177 = vld [vmem:[#allocation5 + $0x3e0] sm:$0xff]
    %v178 = vld [vmem:[#allocation5 + $0x3e8] sm:$0xff]
    %v179 = vld [vmem:[#allocation5 + $0x3f0] sm:$0xff]
    %v180 = vld [vmem:[#allocation5 + $0x3f8] sm:$0xff]
    %v181 = vld [vmem:[#allocation7] sm:$0xff]
    %v183 = vlaneseq
    %v184 = vshrl.u32 %v183, 7
    %v185 = vsub.s32 0, %v184
    %v186 = vrot.slane %v181, %v185
    %v187 = vlaneseq
    %v188 = vshrl.u32 %v187, 7
    %v189 = vsub.s32 1, %v188
    %v190 = vrot.slane %v181, %v189
    %v191 = vlaneseq
    %v192 = vshrl.u32 %v191, 7
    %v193 = vsub.s32 2, %v192
    %v194 = vrot.slane %v181, %v193
    %v195 = vlaneseq
    %v196 = vshrl.u32 %v195, 7
    %v197 = vsub.s32 3, %v196
    %v198 = vrot.slane %v181, %v197
    %v199 = vlaneseq
    %v200 = vshrl.u32 %v199, 7
    %v201 = vsub.s32 4, %v200
    %v202 = vrot.slane %v181, %v201
    %v203 = vlaneseq
    %v204 = vshrl.u32 %v203, 7
    %v205 = vsub.s32 5, %v204
    %v206 = vrot.slane %v181, %v205
    %v207 = vlaneseq
    %v208 = vshrl.u32 %v207, 7
    %v209 = vsub.s32 6, %v208
    %v210 = vrot.slane %v181, %v209
    %v211 = vlaneseq
    %v212 = vshrl.u32 %v211, 7
    %v213 = vsub.s32 7, %v212
    %v214 = vrot.slane %v181, %v213
    %223 = vmatprep.subr.mxu0 %v174
    %224 = vmatpush1.msra.mxu0 %v173
    %225 = vmatprep.subr.mxu0 %v166
    %226 = vmatpush1.msra.mxu0 %v165
    %227 = vmatprep.subr.mxu0 %v158
    %228 = vmatpush1.msra.mxu0 %v157
    %229 = vmatprep.subr.mxu0 %v150
    %230 = vmatpush1.msra.mxu0 %v149
    %231 = vmatprep.subr.mxu0 %v142
    %232 = vmatpush1.msra.mxu0 %v141
    %233 = vmatprep.subr.mxu0 %v134
    %234 = vmatpush1.msra.mxu0 %v133
    %235 = vmatprep.subr.mxu0 %v126
    %236 = vmatpush1.msra.mxu0 %v125
    %237 = vmatprep.subr.mxu0 %v118
    %238 = vmatpush1.msra.mxu0 %v117
    %239 = vmatprep.subr.mxu0 %v110
    %240 = vmatpush1.msra.mxu0 %v109
    %241 = vmatprep.subr.mxu0 %v102
    %242 = vmatpush1.msra.mxu0 %v101
    %243 = vmatprep.subr.mxu0 %v94
    %244 = vmatpush1.msra.mxu0 %v93
    %245 = vmatprep.subr.mxu0 %v86
    %246 = vmatpush1.msra.mxu0 %v85
    %247 = vmatprep.subr.mxu0 %v78
    %248 = vmatpush1.msra.mxu0 %v77
    %249 = vmatprep.subr.mxu0 %v70
    %250 = vmatpush1.msra.mxu0 %v69
    %251 = vmatprep.subr.mxu0 %v62
    %252 = vmatpush1.msra.mxu0 %v61
    %253 = vmatprep.subr.mxu0 %v54
    %254 = vmatpush1.msra.mxu0 %v53
    %255 = vmatprep.subr.mxu0 0.0
    %256 = vmatpush2.msra.mxu0 0.0
    %257 = vmatprep.subr.mxu0 0.0
    %258 = vmatpush2.msra.mxu0 0.0
    %259 = vmatprep.subr.mxu0 0.0
    %260 = vmatpush2.msra.mxu0 0.0
    %261 = vmatprep.subr.mxu0 0.0
    %262 = vmatpush2.msra.mxu0 0.0
    %263 = vmatprep.subr.mxu0 0.0
    %264 = vmatpush2.msra.mxu0 0.0
    %265 = vmatprep.subr.mxu0 0.0
    %266 = vmatpush2.msra.mxu0 0.0
    %267 = vmatprep.subr.mxu0 0.0
    %268 = vmatpush2.msra.mxu0 0.0
    %269 = vmatprep.subr.mxu0 0.0
    %270 = vmatpush2.msra.mxu0 0.0
    %271 = vmatprep.subr.mxu0 0.0
    %272 = vmatpush2.msra.mxu0 0.0
    %273 = vmatprep.subr.mxu0 0.0
    %274 = vmatpush2.msra.mxu0 0.0
    %275 = vmatprep.subr.mxu0 0.0
    %276 = vmatpush2.msra.mxu0 0.0
    %277 = vmatprep.subr.mxu0 0.0
    %278 = vmatpush2.msra.mxu0 0.0
    %279 = vmatprep.subr.mxu0 0.0
    %280 = vmatpush2.msra.mxu0 0.0
    %281 = vmatprep.subr.mxu0 0.0
    %282 = vmatpush2.msra.mxu0 0.0
    %283 = vmatprep.subr.mxu0 0.0
    %284 = vmatpush2.msra.mxu0 0.0
    %285 = vmatprep.subr.mxu0 0.0
    %286 = vmatpush2.msra.mxu0 0.0
    %287 = vmatprep.mubr.f32.mxu0 0.0
    %288 = vmatmul.mubr.f32.gmra.mxu0 %v52
    %v289 = vpop.f32.mrf.mxu0
    %v290 = vadd.f32 %v186, %v289
    %v291 = vpop.f32.mrf.mxu0
    %v292 = vadd.f32 %v190, %v291
    %293 = vdwg.mxu0
    %294 = vmatprep.subr.mxu0 %v176
    %295 = vmatpush1.msra.mxu0 %v175
    %296 = vmatprep.subr.mxu0 %v168
    %297 = vmatpush1.msra.mxu0 %v167
    %298 = vmatprep.subr.mxu0 %v160
    %299 = vmatpush1.msra.mxu0 %v159
    %300 = vmatprep.subr.mxu0 %v152
    %301 = vmatpush1.msra.mxu0 %v151
    %302 = vmatprep.subr.mxu0 %v144
    %303 = vmatpush1.msra.mxu0 %v143
    %304 = vmatprep.subr.mxu0 %v136
    %305 = vmatpush1.msra.mxu0 %v135
    %306 = vmatprep.subr.mxu0 %v128
    %307 = vmatpush1.msra.mxu0 %v127
    %308 = vmatprep.subr.mxu0 %v120
    %309 = vmatpush1.msra.mxu0 %v119
    %310 = vmatprep.subr.mxu0 %v112
    %311 = vmatpush1.msra.mxu0 %v111
    %312 = vmatprep.subr.mxu0 %v104
    %313 = vmatpush1.msra.mxu0 %v103
    %314 = vmatprep.subr.mxu0 %v96
    %315 = vmatpush1.msra.mxu0 %v95
    %316 = vmatprep.subr.mxu0 %v88
    %317 = vmatpush1.msra.mxu0 %v87
    %318 = vmatprep.subr.mxu0 %v80
    %319 = vmatpush1.msra.mxu0 %v79
    %320 = vmatprep.subr.mxu0 %v72
    %321 = vmatpush1.msra.mxu0 %v71
    %322 = vmatprep.subr.mxu0 %v64
    %323 = vmatpush1.msra.mxu0 %v63
    %324 = vmatprep.subr.mxu0 %v56
    %325 = vmatpush1.msra.mxu0 %v55
    %326 = vmatprep.subr.mxu0 0.0
    %327 = vmatpush2.msra.mxu0 0.0
    %328 = vmatprep.subr.mxu0 0.0
    %329 = vmatpush2.msra.mxu0 0.0
    %330 = vmatprep.subr.mxu0 0.0
    %331 = vmatpush2.msra.mxu0 0.0
    %332 = vmatprep.subr.mxu0 0.0
    %333 = vmatpush2.msra.mxu0 0.0
    %334 = vmatprep.subr.mxu0 0.0
    %335 = vmatpush2.msra.mxu0 0.0
    %336 = vmatprep.subr.mxu0 0.0
    %337 = vmatpush2.msra.mxu0 0.0
    %338 = vmatprep.subr.mxu0 0.0
    %339 = vmatpush2.msra.mxu0 0.0
    %340 = vmatprep.subr.mxu0 0.0
    %341 = vmatpush2.msra.mxu0 0.0
    %342 = vmatprep.subr.mxu0 0.0
    %343 = vmatpush2.msra.mxu0 0.0
    %344 = vmatprep.subr.mxu0 0.0
    %345 = vmatpush2.msra.mxu0 0.0
    %346 = vmatprep.subr.mxu0 0.0
    %347 = vmatpush2.msra.mxu0 0.0
    %348 = vmatprep.subr.mxu0 0.0
    %349 = vmatpush2.msra.mxu0 0.0
    %350 = vmatprep.subr.mxu0 0.0
    %351 = vmatpush2.msra.mxu0 0.0
    %352 = vmatprep.subr.mxu0 0.0
    %353 = vmatpush2.msra.mxu0 0.0
    %354 = vmatprep.subr.mxu0 0.0
    %355 = vmatpush2.msra.mxu0 0.0
    %356 = vmatprep.subr.mxu0 0.0
    %357 = vmatpush2.msra.mxu0 0.0
    %358 = vmatprep.mubr.f32.mxu0 0.0
    %359 = vmatmul.mubr.f32.gmra.mxu0 %v52
    %v360 = vpop.f32.mrf.mxu0
    %v361 = vadd.f32 %v194, %v360
    %v362 = vpop.f32.mrf.mxu0
    %v363 = vadd.f32 %v198, %v362
    %364 = vdwg.mxu0
    %365 = vmatprep.subr.mxu0 %v178
    %366 = vmatpush1.msra.mxu0 %v177
    %367 = vmatprep.subr.mxu0 %v170
    %368 = vmatpush1.msra.mxu0 %v169
    %369 = vmatprep.subr.mxu0 %v162
    %370 = vmatpush1.msra.mxu0 %v161
    %371 = vmatprep.subr.mxu0 %v154
    %372 = vmatpush1.msra.mxu0 %v153
    %373 = vmatprep.subr.mxu0 %v146
    %374 = vmatpush1.msra.mxu0 %v145
    %375 = vmatprep.subr.mxu0 %v138
    %376 = vmatpush1.msra.mxu0 %v137
    %377 = vmatprep.subr.mxu0 %v130
    %378 = vmatpush1.msra.mxu0 %v129
    %379 = vmatprep.subr.mxu0 %v122
    %380 = vmatpush1.msra.mxu0 %v121
    %381 = vmatprep.subr.mxu0 %v114
    %382 = vmatpush1.msra.mxu0 %v113
    %383 = vmatprep.subr.mxu0 %v106
    %384 = vmatpush1.msra.mxu0 %v105
    %385 = vmatprep.subr.mxu0 %v98
    %386 = vmatpush1.msra.mxu0 %v97
    %387 = vmatprep.subr.mxu0 %v90
    %388 = vmatpush1.msra.mxu0 %v89
    %389 = vmatprep.subr.mxu0 %v82
    %390 = vmatpush1.msra.mxu0 %v81
    %391 = vmatprep.subr.mxu0 %v74
    %392 = vmatpush1.msra.mxu0 %v73
    %393 = vmatprep.subr.mxu0 %v66
    %394 = vmatpush1.msra.mxu0 %v65
    %395 = vmatprep.subr.mxu0 %v58
    %396 = vmatpush1.msra.mxu0 %v57
    %397 = vmatprep.subr.mxu0 0.0
    %398 = vmatpush2.msra.mxu0 0.0
    %399 = vmatprep.subr.mxu0 0.0
    %400 = vmatpush2.msra.mxu0 0.0
    %401 = vmatprep.subr.mxu0 0.0
    %402 = vmatpush2.msra.mxu0 0.0
    %403 = vmatprep.subr.mxu0 0.0
    %404 = vmatpush2.msra.mxu0 0.0
    %405 = vmatprep.subr.mxu0 0.0
    %406 = vmatpush2.msra.mxu0 0.0
    %407 = vmatprep.subr.mxu0 0.0
    %408 = vmatpush2.msra.mxu0 0.0
    %409 = vmatprep.subr.mxu0 0.0
    %410 = vmatpush2.msra.mxu0 0.0
    %411 = vmatprep.subr.mxu0 0.0
    %412 = vmatpush2.msra.mxu0 0.0
    %413 = vmatprep.subr.mxu0 0.0
    %414 = vmatpush2.msra.mxu0 0.0
    %415 = vmatprep.subr.mxu0 0.0
    %416 = vmatpush2.msra.mxu0 0.0
    %417 = vmatprep.subr.mxu0 0.0
    %418 = vmatpush2.msra.mxu0 0.0
    %419 = vmatprep.subr.mxu0 0.0
    %420 = vmatpush2.msra.mxu0 0.0
    %421 = vmatprep.subr.mxu0 0.0
    %422 = vmatpush2.msra.mxu0 0.0
    %423 = vmatprep.subr.mxu0 0.0
    %424 = vmatpush2.msra.mxu0 0.0
    %425 = vmatprep.subr.mxu0 0.0
    %426 = vmatpush2.msra.mxu0 0.0
    %427 = vmatprep.subr.mxu0 0.0
    %428 = vmatpush2.msra.mxu0 0.0
    %429 = vmatprep.mubr.f32.mxu0 0.0
    %430 = vmatmul.mubr.f32.gmra.mxu0 %v52
    %v431 = vpop.f32.mrf.mxu0
    %v432 = vadd.f32 %v202, %v431
    %v433 = vpop.f32.mrf.mxu0
    %v434 = vadd.f32 %v206, %v433
    %435 = vdwg.mxu0
    %436 = vmatprep.subr.mxu0 %v180
    %437 = vmatpush1.msra.mxu0 %v179
    %438 = vmatprep.subr.mxu0 %v172
    %439 = vmatpush1.msra.mxu0 %v171
    %440 = vmatprep.subr.mxu0 %v164
    %441 = vmatpush1.msra.mxu0 %v163
    %442 = vmatprep.subr.mxu0 %v156
    %443 = vmatpush1.msra.mxu0 %v155
    %444 = vmatprep.subr.mxu0 %v148
    %445 = vmatpush1.msra.mxu0 %v147
    %446 = vmatprep.subr.mxu0 %v140
    %447 = vmatpush1.msra.mxu0 %v139
    %448 = vmatprep.subr.mxu0 %v132
    %449 = vmatpush1.msra.mxu0 %v131
    %450 = vmatprep.subr.mxu0 %v124
    %451 = vmatpush1.msra.mxu0 %v123
    %452 = vmatprep.subr.mxu0 %v116
    %453 = vmatpush1.msra.mxu0 %v115
    %454 = vmatprep.subr.mxu0 %v108
    %455 = vmatpush1.msra.mxu0 %v107
    %456 = vmatprep.subr.mxu0 %v100
    %457 = vmatpush1.msra.mxu0 %v99
    %458 = vmatprep.subr.mxu0 %v92
    %459 = vmatpush1.msra.mxu0 %v91
    %460 = vmatprep.subr.mxu0 %v84
    %461 = vmatpush1.msra.mxu0 %v83
    %462 = vmatprep.subr.mxu0 %v76
    %463 = vmatpush1.msra.mxu0 %v75
    %464 = vmatprep.subr.mxu0 %v68
    %465 = vmatpush1.msra.mxu0 %v67
    %466 = vmatprep.subr.mxu0 %v60
    %467 = vmatpush1.msra.mxu0 %v59
    %468 = vmatprep.subr.mxu0 0.0
    %469 = vmatpush2.msra.mxu0 0.0
    %470 = vmatprep.subr.mxu0 0.0
    %471 = vmatpush2.msra.mxu0 0.0
    %472 = vmatprep.subr.mxu0 0.0
    %473 = vmatpush2.msra.mxu0 0.0
    %474 = vmatprep.subr.mxu0 0.0
    %475 = vmatpush2.msra.mxu0 0.0
    %476 = vmatprep.subr.mxu0 0.0
    %477 = vmatpush2.msra.mxu0 0.0
    %478 = vmatprep.subr.mxu0 0.0
    %479 = vmatpush2.msra.mxu0 0.0
    %480 = vmatprep.subr.mxu0 0.0
    %481 = vmatpush2.msra.mxu0 0.0
    %482 = vmatprep.subr.mxu0 0.0
    %483 = vmatpush2.msra.mxu0 0.0
    %484 = vmatprep.subr.mxu0 0.0
    %485 = vmatpush2.msra.mxu0 0.0
    %486 = vmatprep.subr.mxu0 0.0
    %487 = vmatpush2.msra.mxu0 0.0
    %488 = vmatprep.subr.mxu0 0.0
    %489 = vmatpush2.msra.mxu0 0.0
    %490 = vmatprep.subr.mxu0 0.0
    %491 = vmatpush2.msra.mxu0 0.0
    %492 = vmatprep.subr.mxu0 0.0
    %493 = vmatpush2.msra.mxu0 0.0
    %494 = vmatprep.subr.mxu0 0.0
    %495 = vmatpush2.msra.mxu0 0.0
    %496 = vmatprep.subr.mxu0 0.0
    %497 = vmatpush2.msra.mxu0 0.0
    %498 = vmatprep.subr.mxu0 0.0
    %499 = vmatpush2.msra.mxu0 0.0
    %500 = vmatprep.mubr.f32.mxu0 0.0
    %501 = vmatmul.mubr.f32.gmra.mxu0 %v52
    %v502 = vpop.f32.mrf.mxu0
    %v503 = vadd.f32 %v210, %v502
    %v504 = vpop.f32.mrf.mxu0
    %v505 = vadd.f32 %v214, %v504
    %506 = vdwg.mxu0
    %v515 = vcombine.low %v290, %v292
    %v516 = vcombine.low %v361, %v363
    %v517 = vcombine.low %v432, %v434
    %v518 = vcombine.low %v503, %v505
    %v520 = vunpack.c.l.s4 1966171168
    %v521 = vunpack.c.0.s8 %v520
    %v522 = vlaneseq
    %v523 = vshrl.u32 %v522, 7
    %v524 = vsub.s32 %v521, %v523
    %v525 = vrot.slane %v515, %v524
    %v527 = vunpack.c.l.s4 1966171168
    %v528 = vunpack.c.0.s8 %v527
    %v529 = vlaneseq
    %v530 = vshrl.u32 %v529, 7
    %v531 = vsub.s32 %v528, %v530
    %v532 = vrot.slane %v516, %v531
    %v534 = vunpack.c.l.s4 1966171168
    %v535 = vunpack.c.0.s8 %v534
    %v536 = vlaneseq
    %v537 = vshrl.u32 %v536, 7
    %v538 = vsub.s32 %v535, %v537
    %v539 = vrot.slane %v517, %v538
    %v541 = vunpack.c.l.s4 1966171168
    %v542 = vunpack.c.0.s8 %v541
    %v543 = vlaneseq
    %v544 = vshrl.u32 %v543, 7
    %v545 = vsub.s32 %v542, %v544
    %v546 = vrot.slane %v518, %v545
    %v547 = vcombine.low %v525, %v532
    %v548 = vcombine.low %v539, %v546
    %v550 = vunpack.c.l.s4 1966171168
    %v551 = vunpack.c.0.s8 %v550
    %v552 = vlaneseq
    %v553 = vshrl.u32 %v552, 7
    %v554 = vsub.s32 %v551, %v553
    %v555 = vrot.slane %v547, %v554
    %v557 = vunpack.c.l.s4 1966171168
    %v558 = vunpack.c.0.s8 %v557
    %v559 = vlaneseq
    %v560 = vshrl.u32 %v559, 7
    %v561 = vsub.s32 %v558, %v560
    %v562 = vrot.slane %v548, %v561
    %v563 = vcombine.low %v555, %v562
    %565 = vst [vmem:[#allocation8] sm:$0xff] %v563
    // Predicated region
    $region26: #{tpu_custom_call.1} parent=1 // pred_check
      _
    $region27: #{tpu_custom_call.1} parent=1 // pred_check_branch
      %567 = sbr.rel (0) target = $region29
    $region28: #{tpu_custom_call.1} parent=1 // pred_region
      %s569 = ssub.s32 128, 128
      %570 = vsyncadd [#allocation4], %s569
      %s572 = sshll.u32 [#allocation8], 4
      %s573 = int_to_ptr.vmem [resolvable:$true] %s572
      %575 = dma.vmem_to_hbm [thread:$0]  %s573, 128, %s3, [#allocation4]
    $region29: #{tpu_custom_call.1} parent=1 // pred_fallthru
      _
    // Predicated region
    $region30: #{tpu_custom_call.1} parent=1 // pred_check
      _
    $region31: #{tpu_custom_call.1} parent=1 // pred_check_branch
      %577 = sbr.rel (0) target = $region33
    $region32: #{tpu_custom_call.1} parent=1 // pred_region
      %578 = dma.done [#allocation4], 128
    $region33: #{tpu_custom_call.1} parent=1 // pred_fallthru
      _
    %579 = vsyncpa [#allocation3], 1
    %580 = vsyncpa [#allocation6], 1
    %581 = vsyncpa [#allocation4], 1

</llo_original>
